<compile_context>
chip_gen: v6e
topology: v6e:2x2x1
jax: 0.10.0
libtpu: 0.0.40
codegen_flags: <defaults>
</compile_context>

<pallas_src>
import functools

import jax
import jax.numpy as jnp
from jax.experimental import pallas as pl
from jax.experimental.pallas import tpu as pltpu


def _vmem_limits():
    """Return (vmem_limit_bytes, per-step working-set budget), generation gated."""
    cap = 64 << 20                                   # assume v7x-sized VMEM if unknown
    try:
        cap = int(getattr(pltpu.get_tpu_info(), "vmem_capacity_bytes", cap))
    except Exception:
        pass
    limit = min(cap * 3 // 4, 96 << 20)              # 48 MiB on v7x, 96 MiB on v5e/v6e
    budget = max(limit - (8 << 20), 8 << 20)         # headroom: out bufs, weight, scratch
    return limit, budget


def _pick_row_tile(n_rows: int, hidden: int, itemsize: int, budget_bytes: int) -> int:
    """Largest row tile whose double-buffered input + f32 temporaries fit the budget."""
    # 2x native-dtype input buffers (pipelining) + ~2 full-tile f32 temporaries
    # (the f32 cast of x and the x*w product) live per step.
    per_row = 2 * hidden * itemsize + 2 * hidden * 4
    tm = max(1, budget_bytes // per_row)
    sub = max(8, 32 // itemsize)                     # sublane packing: 8 f32, 16 bf16, 32 i8
    n_round = -(-n_rows // sub) * sub
    tm = min(tm, n_round)
    if n_round >= 128:
        # Multiple of 128 rows keeps (8,128)-native input tiles and a lane-dense
        # (1,1,tm) output row; floor at 128 even if the budget says less (huge-H edge).
        tm = max(128, (tm // 128) * 128)
    else:
        tm = n_round                                 # single (partial) block covers all rows
    return int(tm)


def value_head_kernel(scal_ref, x_ref, w_ref, out_ref, *, use_tanh: bool):
    """One grid step handles a (tm, H) tile of flattened tokens.

    scal_ref : SMEM (3,)   f32  [bias, normalisation, 1/normalisation_std]
    x_ref    : VMEM (tm, H)     hidden-state tile in its NATIVE dtype (bf16/f32)
    w_ref    : VMEM (1, H) f32  Linear weight (out_features == 1), pre-cast once
    out_ref  : VMEM (1, 1, tm) f32  lane-dense row of per-token values
    """
    x = x_ref[...].astype(jnp.float32)               # cast after the DMA (no-op for f32)
    # Linear(H -> 1): row-wise dot product (VPU mul + lane reduce) + bias.
    v = jnp.sum(x * w_ref[...], axis=-1, keepdims=True) + scal_ref[0]   # (tm, 1)
    if use_tanh:                                     # nn.Tanh() if config flag set (EUP)
        v = jnp.tanh(v)
    v = (v + scal_ref[1]) * scal_ref[2]              # (v + normalisation) * (1/std)
    # (tm,1) column -> (1,tm) lane-major row: tiny XLU transpose, unmasked lane-dense store.
    out_ref[...] = jnp.transpose(v).reshape(out_ref.shape)


def _as_scalar_f32(v):
    return jnp.asarray(v, jnp.float32).reshape(-1)[0]


def value_head_forward(hidden_states, weight, bias, normalisation,
                       normalisation_std, *, use_tanh=True, tm=None):
    """hidden_states: (B, S, H); weight: (1, H); bias: scalar/(1,). Returns (B, S) f32."""
    B, S, H = hidden_states.shape
    N = B * S
    itemsize = jnp.dtype(hidden_states.dtype).itemsize
    vmem_limit, budget = _vmem_limits()
    if tm is None:
        tm = _pick_row_tile(N, H, itemsize, budget)
    num_tiles = -(-N // tm)

    x = hidden_states.reshape(N, H)                       # free view, native dtype in HBM
    w = weight.reshape(1, H).astype(jnp.float32)          # tiny; removes per-step cast
    scal = jnp.stack([_as_scalar_f32(bias),
                      _as_scalar_f32(normalisation),
                      jnp.float32(1.0) / _as_scalar_f32(normalisation_std)])

    cost = pl.CostEstimate(
        flops=2 * N * H,
        transcendentals=N if use_tanh else 0,
        bytes_accessed=N * H * itemsize + H * 4 + num_tiles * tm * 4 + 3 * 4,
    )

    out = pl.pallas_call(
        functools.partial(value_head_kernel, use_tanh=use_tanh),
        out_shape=jax.ShapeDtypeStruct((num_tiles, 1, tm), jnp.float32),
        grid=(num_tiles,),
        in_specs=[
            pl.BlockSpec(memory_space=pltpu.MemorySpace.SMEM),   # scalars
            pl.BlockSpec((tm, H), lambda i: (i, 0)),             # hidden tile (native dtype)
            pl.BlockSpec((1, H), lambda i: (0, 0)),              # weight (resident, f32)
        ],
        out_specs=pl.BlockSpec((1, 1, tm), lambda i: (i, 0, 0)), # lane-dense row per tile
        compiler_params=pltpu.CompilerParams(
            dimension_semantics=("parallel",),
            vmem_limit_bytes=vmem_limit),
        cost_estimate=cost,
    )(scal, x, w)

    # Drop the partial-block tail and apply nn.Flatten() -> (B, S).
    return out.reshape(num_tiles * tm)[:N].reshape(B, S)


def _reference(hidden_states, weight, bias, normalisation, normalisation_std, use_tanh):
    B, S, H = hidden_states.shape
    x = hidden_states.reshape(B * S, H).astype(jnp.float32)
    v = jnp.sum(x * weight.reshape(1, H).astype(jnp.float32), axis=-1, keepdims=True)
    v = v + jnp.asarray(bias, jnp.float32).reshape(-1)[0]
    if use_tanh:
        v = jnp.tanh(v)
    return (v.reshape(B, S) + normalisation) / normalisation_std


if __name__ == "__main__":
    key = jax.random.PRNGKey(0)
    k_x, k_w, k_b = jax.random.split(key, 3)

    B, S, H = 2, 8, 32
    hidden_states = jax.random.normal(k_x, (B, S, H), dtype=jnp.float32)
    weight = jax.random.normal(k_w, (1, H), dtype=jnp.float32) * 0.02   # nn.Linear(H, 1)
    bias = jax.random.normal(k_b, (1,), dtype=jnp.float32) * 0.02
    normalisation, normalisation_std = 0.5, 2.0

    # 1) small f32, tanh head (config.value_head_activation = True)
    out = jax.block_until_ready(value_head_forward(
        hidden_states, weight, bias, normalisation, normalisation_std, use_tanh=True))
    ref = _reference(hidden_states, weight, bias, normalisation, normalisation_std, True)
    assert out.shape == (B, S)
    assert jnp.allclose(out, ref, atol=1e-5, rtol=1e-5)

    # 2) ragged B*S (not a sublane multiple) -> partial-block tail path, no padding copy
    hs2 = jax.random.normal(k_x, (B, 7, H), dtype=jnp.float32)
    out2 = jax.block_until_ready(value_head_forward(
        hs2, weight, bias, normalisation, normalisation_std, use_tanh=True))
    ref2 = _reference(hs2, weight, bias, normalisation, normalisation_std, True)
    assert out2.shape == (B, 7)
    assert jnp.allclose(out2, ref2, atol=1e-5, rtol=1e-5)

    # 3) bf16 activations (native-dtype HBM traffic, in-kernel f32 accumulation), Identity head
    hs3 = jax.random.normal(k_x, (B, S, H), dtype=jnp.bfloat16)
    out3 = jax.block_until_ready(value_head_forward(
        hs3, weight, bias, normalisation, normalisation_std, use_tanh=False))
    ref3 = _reference(hs3, weight, bias, normalisation, normalisation_std, False)
    assert jnp.allclose(out3, ref3, atol=1e-5, rtol=1e-5)

    # 4) multi-tile grid with a partial last input block (forced small tile)
    B4, S4, H4 = 2, 500, 256
    hs4 = jax.random.normal(k_x, (B4, S4, H4), dtype=jnp.float32)
    w4 = jax.random.normal(k_w, (1, H4), dtype=jnp.float32) * 0.02
    out4 = jax.block_until_ready(value_head_forward(
        hs4, w4, bias, normalisation, normalisation_std, use_tanh=True, tm=128))
    ref4 = _reference(hs4, w4, bias, normalisation, normalisation_std, True)
    assert out4.shape == (B4, S4)
    assert jnp.allclose(out4, ref4, atol=1e-5, rtol=1e-5)

    print("KERNEL_OK")
</pallas_src>

<mosaic_0001>
module attributes {stable_mosaic.version = 11 : i64} {
  func.func @value_head_kernel(%arg0: i32, %arg1: memref<3xf32, #tpu.memory_space<smem>>, %arg2: memref<16x32xf32, #tpu.memory_space<vmem>>, %arg3: memref<1x32xf32, #tpu.memory_space<vmem>>, %arg4: memref<1x1x16xf32, #tpu.memory_space<vmem>>) attributes {dimension_semantics = [#tpu.dimension_semantics<parallel>], iteration_bounds = array<i64: 1>, scalar_prefetch = 0 : i64, scratch_operands = 0 : i64, tpu.core_type = #tpu.core_type<tc>, window_params = [{transform_indices = @transform_0, window_bounds = array<i64: 3>}, {transform_indices = @transform_1, window_bounds = array<i64: 16, 32>}, {pipeline_mode = #tpu.pipeline_mode<synchronous>, transform_indices = @transform_2, window_bounds = array<i64: 1, 32>}, {transform_indices = @transform_3, window_bounds = array<i64: 1, 1, 16>}]} {
    %c0 = arith.constant 0 : index
    %c0_0 = arith.constant 0 : index
    %0 = vector.load %arg2[%c0, %c0_0] : memref<16x32xf32, #tpu.memory_space<vmem>>, vector<16x32xf32>
    %c0_1 = arith.constant 0 : index
    %c0_2 = arith.constant 0 : index
    %1 = vector.load %arg3[%c0_1, %c0_2] : memref<1x32xf32, #tpu.memory_space<vmem>>, vector<1x32xf32>
    %2 = vector.broadcast %1 : vector<1x32xf32> to vector<16x32xf32>
    %3 = arith.mulf %0, %2 : vector<16x32xf32>
    %cst = arith.constant dense<0.000000e+00> : vector<16xf32>
    %4 = vector.multi_reduction <add>, %3, %cst [1] : vector<16x32xf32> to vector<16xf32>
    %5 = vector.shape_cast %4 : vector<16xf32> to vector<16x1xf32>
    %c0_3 = arith.constant 0 : index
    %6 = memref.load %arg1[%c0_3] : memref<3xf32, #tpu.memory_space<smem>>
    %7 = vector.broadcast %6 : f32 to vector<16x1xf32>
    %8 = arith.addf %5, %7 : vector<16x1xf32>
    %9 = math.tanh %8 : vector<16x1xf32>
    %c1 = arith.constant 1 : index
    %10 = memref.load %arg1[%c1] : memref<3xf32, #tpu.memory_space<smem>>
    %11 = vector.broadcast %10 : f32 to vector<16x1xf32>
    %12 = arith.addf %9, %11 : vector<16x1xf32>
    %c2 = arith.constant 2 : index
    %13 = memref.load %arg1[%c2] : memref<3xf32, #tpu.memory_space<smem>>
    %14 = vector.broadcast %13 : f32 to vector<16x1xf32>
    %15 = arith.mulf %12, %14 : vector<16x1xf32>
    %16 = tpu.transpose %15, [1, 0] : vector<16x1xf32> -> vector<1x16xf32>
    %17 = vector.shape_cast %16 : vector<1x16xf32> to vector<1x1x16xf32>
    %c0_4 = arith.constant 0 : index
    %c0_5 = arith.constant 0 : index
    %c0_6 = arith.constant 0 : index
    %18 = vector.load %arg4[%c0_4, %c0_5, %c0_6] : memref<1x1x16xf32, #tpu.memory_space<vmem>>, vector<1x1x16xf32>
    tpu.vector_store %arg4[%c0_4, %c0_5, %c0_6], %17 {strides = array<i32>} : memref<1x1x16xf32, #tpu.memory_space<vmem>>, vector<1x1x16xf32>,
    return
  }
  func.func @transform_0(%arg0: i32) -> i32 {
    %c0_i32 = arith.constant 0 : i32
    %c0_i32_0 = arith.constant 0 : i32
    return %c0_i32 : i32
  }
  func.func @transform_1(%arg0: i32) -> (i32, i32) {
    %c0_i32 = arith.constant 0 : i32
    %c0_i32_0 = arith.constant 0 : i32
    return %arg0, %c0_i32 : i32, i32
  }
  func.func @transform_2(%arg0: i32) -> (i32, i32) {
    %c0_i32 = arith.constant 0 : i32
    %c0_i32_0 = arith.constant 0 : i32
    %c0_i32_1 = arith.constant 0 : i32
    return %c0_i32, %c0_i32_0 : i32, i32
  }
  func.func @transform_3(%arg0: i32) -> (i32, i32, i32) {
    %c0_i32 = arith.constant 0 : i32
    %c0_i32_0 = arith.constant 0 : i32
    %c0_i32_1 = arith.constant 0 : i32
    return %arg0, %c0_i32, %c0_i32_0 : i32, i32, i32
  }
}

</mosaic_0001>

<llo_original>
// kernel: tpu_custom_call.1
$region0: #{tpu_custom_call.1}
  #allocation0 [shape = 'u32[]', space=smem, size = 0x4, offset = 0x4, fixed_abs, tag = 'smem constant byte address 0x4 - core index']
  #allocation1 [shape = 'u32[144,128]{1,0:T(1,128)}', space=vmem, size = 0x12000, scoped, tag = 'internal scratch']
  %s0 = inlined_call_operand.hbm [shape: f32[3], index: 0, kind: input, shape index: {}]
  %s1 = inlined_call_operand.hbm [shape: f32[16,32], index: 1, kind: input, shape index: {}]
  %s2 = inlined_call_operand.vmem [shape: f32[1,32], index: 2, kind: input, shape index: {}]
  %s3 = inlined_call_operand.hbm [shape: f32[1,1,16], index: 3, kind: output, shape index: {}]
  %s4 = sld [smem:[#allocation0]]
  $region30: #{tpu_custom_call.1} parent=0
    _
  %s6 = ssub.s32 1, %s4
  %s7 = scalar_select 0, %s6, %s4
  $region1: #{tpu_custom_call.1} parent=0
    #allocation2 [shape = 'u8[512]{0}', space=smem, size = 0x200, scoped, tag = 'input window, operand 0, single buffered']
    #allocation3 [shape = 's32[1]{0}', space=sflag, size = 0x4, scoped, tag = 'scoped memory for tpu_custom_call.1']
    #allocation4 [shape = 's32[1]{0}', space=sflag, size = 0x4, scoped, tag = 'scoped memory for tpu_custom_call.1']
    #allocation5 [shape = 's32[1]{0}', space=sflag, size = 0x4, scoped, tag = 'scoped memory for tpu_custom_call.1']
    #allocation6 [shape = 'u8[8192]{0}', space=vmem, size = 0x2000, scoped, tag = 'input window, operand 1, single buffered']
    #allocation7 [shape = 'u8[512]{0}', space=vmem, size = 0x400, scoped, tag = 'output window, operand 0, single buffered']
    %8 = vsyncpa [#allocation5], 0
    %9 = vsyncpa [#allocation3], 0
    %10 = vsyncpa [#allocation4], 0
    // Predicated region
    $region2: #{tpu_custom_call.1} parent=1 // pred_check
      _
    $region3: #{tpu_custom_call.1} parent=1 // pred_check_branch
      %12 = sbr.rel (0) target = $region5
    $region4: #{tpu_custom_call.1} parent=1 // pred_region
      %s14 = ssub.s32 16, 16
      %15 = vsyncadd [#allocation5], %s14
      %18 = dma.hbm_to_smem %s0, 16, [#allocation2], [#allocation5]
    $region5: #{tpu_custom_call.1} parent=1 // pred_fallthru
      _
    // Predicated region
    $region6: #{tpu_custom_call.1} parent=1 // pred_check
      _
    $region7: #{tpu_custom_call.1} parent=1 // pred_check_branch
      %20 = sbr.rel (0) target = $region9
    $region8: #{tpu_custom_call.1} parent=1 // pred_region
      %s22 = ssub.s32 256, 256
      %23 = vsyncadd [#allocation3], %s22
      %s24 = sshll.u32 [#allocation6], 4
      %s25 = int_to_ptr.vmem [resolvable:$true] %s24
      %30 = dma.hbm_to_vmem [thread:$0]  %s1, 256, %s25, [#allocation3], 128, 128, 8
    $region9: #{tpu_custom_call.1} parent=1 // pred_fallthru
      _
    // Predicated region
    $region10: #{tpu_custom_call.1} parent=1 // pred_check
      _
    $region11: #{tpu_custom_call.1} parent=1 // pred_check_branch
      %32 = sbr.rel (0) target = $region13
    $region12: #{tpu_custom_call.1} parent=1 // pred_region
      _
    $region13: #{tpu_custom_call.1} parent=1 // pred_fallthru
      _
    // Predicated region
    $region14: #{tpu_custom_call.1} parent=1 // pred_check
      _
    $region15: #{tpu_custom_call.1} parent=1 // pred_check_branch
      %34 = sbr.rel (0) target = $region17
    $region16: #{tpu_custom_call.1} parent=1 // pred_region
      %35 = dma.done [#allocation5], 16
    $region17: #{tpu_custom_call.1} parent=1 // pred_fallthru
      _
    // Predicated region
    $region18: #{tpu_custom_call.1} parent=1 // pred_check
      _
    $region19: #{tpu_custom_call.1} parent=1 // pred_check_branch
      %37 = sbr.rel (0) target = $region21
    $region20: #{tpu_custom_call.1} parent=1 // pred_region
      %38 = dma.done [#allocation3], 256
    $region21: #{tpu_custom_call.1} parent=1 // pred_fallthru
      _
    %39 = sfence
    %v40 = vld [vmem:[#allocation6] sm:$0xff]
    %v41 = vld [vmem:[#allocation6 + $0x8] sm:$0xff]
    %v42 = vld [vmem:[%s2] sm:$0x1]
    %v44 = vlaneseq
    %v45 = vshrl.u32 %v44, 7
    %v46 = vsub.s32 0, %v45
    %v47 = vrot.slane %v42, %v46
    %v49 = vmul.f32 %v40, %v47
    %v50 = vmul.f32 %v41, %v47
    %vm51 = vcmask 261120
    %v52 = vsel %vm51, %v49, 0.0
    %53 = vadd.xlane.f32.xlu0 %v52
    %v54 = vpop.xlane.xlu0 %53
    %v55 = vsel %vm51, %v50, 0.0
    %56 = vadd.xlane.f32.xlu0 %v55
    %v57 = vpop.xlane.xlu0 %56
    %s58 = sld [smem:[#allocation2]]
    %v59 = vstv %s58
    %v60 = vadd.f32 %v54, %v59
    %v61 = vadd.f32 %v57, %v59
    %v62 = vtanh.pop %v60
    %v63 = vtanh.pop %v61
    %s64 = sld [smem:[#allocation2 + $0x1]]
    %v65 = vstv %s64
    %v66 = vadd.f32 %v62, %v65
    %v67 = vadd.f32 %v63, %v65
    %s68 = sld [smem:[#allocation2 + $0x2]]
    %v69 = vstv %s68
    %v70 = vmul.f32 %v66, %v69
    %v71 = vmul.f32 %v67, %v69
    %72 = vxpose.xlu0.b32.start [1/16] %v70, 128
    %73 = vxpose.xlu0.b32.cont [2/16] %v71, 128
    %74 = vxpose.xlu0.b32.cont [3/16] 0.0, 128
    %75 = vxpose.xlu0.b32.cont [4/16] 0.0, 128
    %76 = vxpose.xlu0.b32.cont [5/16] 0.0, 128
    %77 = vxpose.xlu0.b32.cont [6/16] 0.0, 128
    %78 = vxpose.xlu0.b32.cont [7/16] 0.0, 128
    %79 = vxpose.xlu0.b32.cont [8/16] 0.0, 128
    %80 = vxpose.xlu0.b32.cont [9/16] 0.0, 128
    %81 = vxpose.xlu0.b32.cont [10/16] 0.0, 128
    %82 = vxpose.xlu0.b32.cont [11/16] 0.0, 128
    %83 = vxpose.xlu0.b32.cont [12/16] 0.0, 128
    %84 = vxpose.xlu0.b32.cont [13/16] 0.0, 128
    %85 = vxpose.xlu0.b32.cont [14/16] 0.0, 128
    %86 = vxpose.xlu0.b32.cont [15/16] 0.0, 128
    %87 = vxpose.xlu0.b32.end [16/16] 0.0, 128
    %v88 = vpop.trf.xlu0
    %v89 = vpop.trf.xlu0
    %v90 = vpop.trf.xlu0
    %v91 = vpop.trf.xlu0
    %v92 = vpop.trf.xlu0
    %v93 = vpop.trf.xlu0
    %v94 = vpop.trf.xlu0
    %v95 = vpop.trf.xlu0
    %v96 = vpop.trf.xlu0
    %v97 = vpop.trf.xlu0
    %v98 = vpop.trf.xlu0
    %v99 = vpop.trf.xlu0
    %v100 = vpop.trf.xlu0
    %v101 = vpop.trf.xlu0
    %v102 = vpop.trf.xlu0
    %v103 = vpop.trf.xlu0
    %vm104 = vcmask 122880
    %105 = vst.msk [vmem:[#allocation7] sm:$0x1] %vm104, %v88
    // Predicated region
    $region22: #{tpu_custom_call.1} parent=1 // pred_check
      _
    $region23: #{tpu_custom_call.1} parent=1 // pred_check_branch
      %107 = sbr.rel (0) target = $region25
    $region24: #{tpu_custom_call.1} parent=1 // pred_region
      %s109 = ssub.s32 16, 16
      %110 = vsyncadd [#allocation4], %s109
      %s112 = sshll.u32 [#allocation7], 4
      %s113 = int_to_ptr.vmem [resolvable:$true] %s112
      %115 = dma.vmem_to_hbm [thread:$0]  %s113, 16, %s3, [#allocation4]
    $region25: #{tpu_custom_call.1} parent=1 // pred_fallthru
      _
    // Predicated region
    $region26: #{tpu_custom_call.1} parent=1 // pred_check
      _
    $region27: #{tpu_custom_call.1} parent=1 // pred_check_branch
      %117 = sbr.rel (0) target = $region29
    $region28: #{tpu_custom_call.1} parent=1 // pred_region
      %118 = dma.done [#allocation4], 16
    $region29: #{tpu_custom_call.1} parent=1 // pred_fallthru
      _
    %119 = vsyncpa [#allocation3], 1
    %120 = vsyncpa [#allocation4], 1
    %121 = vsyncpa [#allocation5], 1

</llo_original>
